<compile_context>
chip_gen: v5e
topology: v5e:2x2
jax: 0.10.0
libtpu: 0.0.40
codegen_flags: <defaults>
</compile_context>

<pallas_src>
import functools

import jax
import jax.numpy as jnp
from jax.experimental import pallas as pl
from jax.experimental.pallas import tpu as pltpu

_LANE = 128
_TARGET_BLOCK_BYTES = 4 * 1024 * 1024     # ~4 MiB x-blocks (>=85% HBM roofline territory)
_MAX_TILE_COLS = 2048                     # lane-axis block cap (multiple of 128)
_VMEM_LIMIT_BYTES = 32 * 1024 * 1024      # fits v7x (64 MiB phys) as well as v5e/v6e


def _sublane_multiple(dtype) -> int:
    # f32 -> 8, bf16/f16 -> 16, int8/fp8 -> 32 (sub-32-bit dtypes pack along sublanes)
    return max(8, 32 // jnp.dtype(dtype).itemsize)


def _choose_tiles(rows, cols, dtype):
    """Pick (tile_rows, tile_cols): (sublane,128)-legal, ~4 MiB, megacore-splittable."""
    itemsize = jnp.dtype(dtype).itemsize
    sm = _sublane_multiple(dtype)

    # Lane axis: full dim (exempt from the 128 rule) or a large multiple of 128.
    tile_cols = cols if cols <= _MAX_TILE_COLS else _MAX_TILE_COLS

    # Sublane axis: aim for ~_TARGET_BLOCK_BYTES per block.
    target_rows = max(sm, _TARGET_BLOCK_BYTES // max(1, tile_cols * itemsize))
    if rows <= target_rows:
        tile_rows = rows                              # full dim -> exempt from sublane rule
    else:
        tile_rows = max(sm, (target_rows // sm) * sm)

    # v7x megacore: make sure the (parallel) grid has >= 2 steps when possible,
    # so both TensorCores (and their DMA engines) get work.
    if pl.cdiv(rows, tile_rows) == 1:
        if rows >= 2 * sm:
            tile_rows = sm * max(1, (rows // 2) // sm)
        elif pl.cdiv(cols, tile_cols) == 1 and cols % (2 * _LANE) == 0:
            tile_cols = cols // 2                     # still lane-dense (multiple of 128)
    return tile_rows, tile_cols


def _orbit_masker_kernel(x_ref, gate_ref, o_ref):
    # gate_ref is either (tile_rows, 1) or (1, tile_cols); both broadcast against x.
    # Multiply in the promoted (f32) dtype, cast back on store (bf16-safe).
    o_ref[...] = (x_ref[...] * gate_ref[...]).astype(o_ref.dtype)


def _run_kernel(x2, gate2, gate_spec, tile_rows, tile_cols):
    rows, cols = x2.shape
    grid = (pl.cdiv(rows, tile_rows), pl.cdiv(cols, tile_cols))
    itemsize = jnp.dtype(x2.dtype).itemsize
    cost = pl.CostEstimate(
        flops=rows * cols,
        transcendentals=0,
        bytes_accessed=2 * rows * cols * itemsize + gate2.size * 4,
    )
    return pl.pallas_call(
        _orbit_masker_kernel,
        out_shape=jax.ShapeDtypeStruct((rows, cols), x2.dtype),
        grid_spec=pltpu.PrefetchScalarGridSpec(
            num_scalar_prefetch=0,
            grid=grid,
            in_specs=[
                pl.BlockSpec((tile_rows, tile_cols), lambda i, j: (i, j)),
                gate_spec,
            ],
            out_specs=pl.BlockSpec((tile_rows, tile_cols), lambda i, j: (i, j)),
        ),
        compiler_params=pltpu.CompilerParams(
            dimension_semantics=("parallel", "parallel"),
            vmem_limit_bytes=_VMEM_LIMIT_BYTES,
        ),
        cost_estimate=cost,
    )(x2, gate2)


@functools.partial(jax.jit, static_argnames=("temperature",))
def orbit_masker(x_nchw, logits_c, temperature, key):
    """x_nchw: (N, C, H, W); logits_c: (C,); temperature: python float; key: PRNG key."""
    N, C, H, W = x_nchw.shape
    hw = H * W

    # --- per-channel gumbel-sigmoid gate (O(C) glue, fused under jit) ----------
    # Noise sign follows the PyTorch reference: -log(log(u2)/log(u1)).
    k1, k2 = jax.random.split(key)
    eps = 1e-6  # clamp away from 0/1 (torch.rand can hit 0 -> -inf noise)
    u1 = jax.random.uniform(k1, (C,), dtype=jnp.float32, minval=eps, maxval=1.0 - eps)
    u2 = jax.random.uniform(k2, (C,), dtype=jnp.float32, minval=eps, maxval=1.0 - eps)
    noise = -jnp.log(jnp.log(u2) / jnp.log(u1))
    inv_t = jnp.float32(1.0 / float(temperature))
    gate_c = jax.nn.sigmoid((logits_c.astype(jnp.float32) + noise) * inv_t)

    # --- view + gate shaping ----------------------------------------------------
    if hw % _LANE == 0:
        # Case A: spatial axis is already lane-dense -> (N*C, H*W) slab.
        rows, cols = N * C, hw
        x2 = x_nchw.reshape(rows, cols)
        gate2 = jnp.tile(gate_c, (N,)).reshape(rows, 1)
        tile_rows, tile_cols = _choose_tiles(rows, cols, x2.dtype)
        # Gate block index changes only with the row grid axis (tiny transfer).
        gate_spec = pl.BlockSpec((tile_rows, 1), lambda i, j: (i, 0))
    else:
        # Case B: H*W not 128-aligned -> lane-dense (N, C*H*W) slab, gate as one
        # pre-expanded (1, C*H*W) row, so all stores stay unmasked full-lane vst.
        rows, cols = N, C * hw
        x2 = x_nchw.reshape(rows, cols)
        gate2 = jnp.repeat(gate_c, hw).reshape(1, cols)
        tile_rows, tile_cols = _choose_tiles(rows, cols, x2.dtype)
        gate_spec = pl.BlockSpec((1, tile_cols), lambda i, j: (0, j))

    out2 = _run_kernel(x2, gate2, gate_spec, tile_rows, tile_cols)
    return out2.reshape(N, C, H, W)


if __name__ == "__main__":
    key = jax.random.PRNGKey(0)
    kx, kl, knoise, kx2 = jax.random.split(key, 4)

    def reference(x, logits, temperature, noise_key):
        # Pure-JAX reference with identical noise draws.
        kk1, kk2 = jax.random.split(noise_key)
        eps = 1e-6
        C = logits.shape[0]
        u1 = jax.random.uniform(kk1, (C,), dtype=jnp.float32, minval=eps, maxval=1.0 - eps)
        u2 = jax.random.uniform(kk2, (C,), dtype=jnp.float32, minval=eps, maxval=1.0 - eps)
        noise = -jnp.log(jnp.log(u2) / jnp.log(u1))
        gate = jax.nn.sigmoid((logits + noise) / temperature).reshape(1, C, 1, 1)
        return x * gate

    temperature = 0.5
    logits = jax.random.normal(kl, (4,), dtype=jnp.float32)

    # Case A: H*W = 256 (multiple of 128) -> (N*C, H*W) lane-dense view.
    N, C, H, W = 2, 4, 16, 16
    x = jax.random.normal(kx, (N, C, H, W), dtype=jnp.float32)
    out = orbit_masker(x, logits, temperature, knoise)
    jax.block_until_ready(out)
    ref = reference(x, logits, temperature, knoise)
    assert jnp.allclose(out, ref, atol=1e-5, rtol=1e-5), "case A mismatch vs reference"

    # Case B: H*W = 49 (not 128-aligned) -> flattened lane-dense (N, C*H*W) view.
    N2, C2, H2, W2 = 2, 4, 7, 7
    xb = jax.random.normal(kx2, (N2, C2, H2, W2), dtype=jnp.float32)
    out_b = orbit_masker(xb, logits, temperature, knoise)
    jax.block_until_ready(out_b)
    ref_b = reference(xb, logits, temperature, knoise)
    assert jnp.allclose(out_b, ref_b, atol=1e-5, rtol=1e-5), "case B mismatch vs reference"

    print("KERNEL_OK")
</pallas_src>

<mosaic_0001>
module attributes {stable_mosaic.version = 11 : i64} {
  func.func @_orbit_masker_kernel(%arg0: i32, %arg1: i32, %arg2: memref<8x128xf32, #tpu.memory_space<vmem>>, %arg3: memref<8x1xf32, #tpu.memory_space<vmem>>, %arg4: memref<8x128xf32, #tpu.memory_space<vmem>>) attributes {dimension_semantics = [#tpu.dimension_semantics<parallel>, #tpu.dimension_semantics<parallel>], iteration_bounds = array<i64: 1, 2>, scalar_prefetch = 0 : i64, scratch_operands = 0 : i64, tpu.core_type = #tpu.core_type<tc>, window_params = [{transform_indices = @transform_0, window_bounds = array<i64: 8, 128>}, {transform_indices = @transform_1, window_bounds = array<i64: 8, 1>}, {transform_indices = @transform_2, window_bounds = array<i64: 8, 128>}]} {
    %c0 = arith.constant 0 : index
    %c0_0 = arith.constant 0 : index
    %0 = vector.load %arg2[%c0, %c0_0] : memref<8x128xf32, #tpu.memory_space<vmem>>, vector<8x128xf32>
    %c0_1 = arith.constant 0 : index
    %c0_2 = arith.constant 0 : index
    %1 = vector.load %arg3[%c0_1, %c0_2] : memref<8x1xf32, #tpu.memory_space<vmem>>, vector<8x1xf32>
    %2 = vector.broadcast %1 : vector<8x1xf32> to vector<8x128xf32>
    %3 = arith.mulf %0, %2 : vector<8x128xf32>
    %c0_3 = arith.constant 0 : index
    %c0_4 = arith.constant 0 : index
    %4 = vector.load %arg4[%c0_3, %c0_4] : memref<8x128xf32, #tpu.memory_space<vmem>>, vector<8x128xf32>
    tpu.vector_store %arg4[%c0_3, %c0_4], %3 {strides = array<i32>} : memref<8x128xf32, #tpu.memory_space<vmem>>, vector<8x128xf32>,
    return
  }
  func.func @transform_0(%arg0: i32, %arg1: i32) -> (i32, i32) {
    %c0_i32 = arith.constant 0 : i32
    return %arg0, %arg1 : i32, i32
  }
  func.func @transform_1(%arg0: i32, %arg1: i32) -> (i32, i32) {
    %c0_i32 = arith.constant 0 : i32
    %c0_i32_0 = arith.constant 0 : i32
    return %arg0, %c0_i32 : i32, i32
  }
  func.func @transform_2(%arg0: i32, %arg1: i32) -> (i32, i32) {
    %c0_i32 = arith.constant 0 : i32
    return %arg0, %arg1 : i32, i32
  }
}

</mosaic_0001>

<llo_original>
// kernel: tile.8
$region0: #{tile.8}
  #allocation0 [shape = 's32[1]{0}', space=sflag, size = 0x4, scoped, tag = 'scoped memory for tile.8']
  %s0 = inlined_call_operand.vmem [shape: f32[4], index: 0, kind: input, shape index: {}]
  %s1 = inlined_call_operand.vmem [shape: f32[2,4], index: 1, kind: output, shape index: {}]
  // Predicated region
  $region2: #{tile.8} parent=0 // pred_check
    _
  $region3: #{tile.8} parent=0 // pred_check_branch
    %3 = sbr.rel (0) target = $region5
  $region4: #{tile.8} parent=0 // pred_region
    _
  $region5: #{tile.8} parent=0 // pred_fallthru
    _
  %v4 = vld [vmem:[%s0] ss:$0 sm:$0xff]
  %5 = vst [vmem:[%s1] sm:$0x3] %v4

// kernel: tile.0
$region0: #{tile.0}
  %s0 = inlined_call_operand.vmem [shape: f32[2,4], index: 0, kind: input, shape index: {}]
  %s1 = inlined_call_operand.vmem [shape: f32[8,1], index: 1, kind: output, shape index: {}]
  $region1: #{tile.0} parent=0
    #allocation0 [shape = 'u8[4096]{0}', space=vmem, size = 0x1000, scoped, tag = 'scoped mem for input reshape']
    %s3 = ssub.s32 4, 1
    %v4 = vld [vmem:[%s0] sm:%s3]
    %5 = vst [vmem:[#allocation0] sm:%s3] %v4
    %v6 = vld [vmem:[#allocation0] sm:$0x3]
    %vm7 = vcmask 7168
    %8 = vst.msk [vmem:[%s1] ss:$4 sm:$0x3] %vm7, %v6
    %v9 = vld [vmem:[#allocation0] sm:$0x3]
    %10 = vrot.lane.b32.xlu0 %v9, 127
    %v11 = vpop.permute.xlu0 %10
    %vm12 = vcmask 7168
    %s13 = scalar_lea.vmem %s1, 1
    %14 = vst.msk [vmem:[%s13] ss:$4 sm:$0x3] %vm12, %v11
    %v15 = vld [vmem:[#allocation0] sm:$0x3]
    %16 = vrot.lane.b32.xlu0 %v15, 126
    %v17 = vpop.permute.xlu0 %16
    %vm18 = vcmask 7168
    %s19 = scalar_lea.vmem %s1, 2
    %20 = vst.msk [vmem:[%s19] ss:$4 sm:$0x3] %vm18, %v17
    %v21 = vld [vmem:[#allocation0] sm:$0x3]
    %22 = vrot.lane.b32.xlu0 %v21, 125
    %v23 = vpop.permute.xlu0 %22
    %vm24 = vcmask 7168
    %s25 = scalar_lea.vmem %s1, 3
    %26 = vst.msk [vmem:[%s25] ss:$4 sm:$0x3] %vm24, %v23

// kernel: orbit_masker.3
$region0: #{orbit_masker.3}
  #allocation0 [shape = 'u32[]', space=smem, size = 0x4, offset = 0x4, fixed_abs, tag = 'smem constant byte address 0x4 - core index']
  #allocation1 [shape = 'u32[72,128]{1,0:T(1,128)}', space=vmem, size = 0x9000, scoped, tag = 'internal scratch']
  %s0 = inlined_call_operand.vmem [shape: f32[8,256], index: 0, kind: input, shape index: {}]
  %s1 = inlined_call_operand.vmem [shape: f32[8,1], index: 1, kind: input, shape index: {}]
  %s2 = inlined_call_operand.vmem [shape: f32[8,256], index: 2, kind: output, shape index: {}]
  %s3 = sld [smem:[#allocation0]]
  $region41: #{orbit_masker.3} parent=0
    _
  %s5 = ssub.s32 1, %s3
  %s6 = scalar_select 0, %s5, %s3
  loop: start=0, step=1, limit=4
  $region2: #{orbit_masker.3} parent=0 // loop_pre_header
    _
  $region3: #{orbit_masker.3} parent=0 // loop_header
    %s8 = sphi 0, %s12
    %p9 = scmp.ge.s32.totalorder %s8, 4
    %s15 = sphi 0, %s27
    %s16 = sphi 0, %s23
    %s17 = sphi 0, %s15
    %s18 = sphi 0, %s16
    %s19 = sphi 0, %s17
    %s20 = sphi 0, %s18
    %s32 = sphi 0, %s34
    %s35 = sphi 0, %s32
    %s36 = sphi 0, %s35
    %s52 = sphi 0, %s36
    %s58 = sphi 0, %s60
    %s61 = sphi 0, %s58
    %s62 = sphi 0, %s61
    %s78 = sphi 0, %s62
    %s86 = sphi 0, %s88
    %s89 = sphi 0, %s86
    %s90 = sphi 0, %s89
    %s106 = sphi 0, %s90
  $region4: #{orbit_masker.3} parent=0 // loop_header_branch
    %11 = sbr.rel (%p9) target = $region8
  $region5: #{orbit_masker.3} parent=0 // loop_body
    %s13 = ssub.s32 %s8, 1
    %s14 = ssub.s32 %s8, 2
    %s21 = sadd.s32 1, %s16
    %p22 = scmp.ge.s32.totalorder %s21, 2
    %s23 = scalar_select %p22, 0, %s21
    %s24 = sadd.s32 1, %s15
    %s25 = scalar_select %p22, %s24, %s15
    %p26 = scmp.ge.s32.totalorder %s25, 1
    %s27 = scalar_select %p26, 0, %s25
    %s28 = ssub.s32 %s15, %s27
    %s29 = ssub.s32 %s16, %s23
    %s30 = sor.u32 %s28, %s29
    %p31 = scmp.eq.s32.totalorder %s30, 0
    %s33 = sadd.s32 %s32, 1
    %s34 = scalar_select %p31, %s32, %s33
    %p37 = pneg %p31
    %p38 = scmp.eq.s32.totalorder %s8, 1
    %p39 = por %p37, %p38
    %p40 = scmp.ne.s32.totalorder %s32, %s35
    %p41 = scmp.eq.s32.totalorder %s8, 0
    %p42 = por %p40, %p41
    %p43 = scmp.ne.s32.totalorder %s32, %s35
    %p44 = scmp.eq.s32.totalorder %s13, 1
    %p45 = por %p43, %p44
    %p46 = scmp.ne.s32.totalorder %s35, %s36
    %p47 = scmp.eq.s32.totalorder %s13, 0
    %p48 = por %p46, %p47
    %p49 = scmp.ne.s32.totalorder %s35, %s36
    %p50 = scmp.eq.s32.totalorder %s14, 1
    %p51 = por %p49, %p50
    %p53 = scmp.ne.s32.totalorder %s36, %s52
    %p54 = scmp.eq.s32.totalorder %s14, 0
    %p55 = por %p53, %p54
    %s56 = ssub.s32 %s15, %s27
    %p57 = scmp.eq.s32.totalorder %s56, 0
    %s59 = sadd.s32 %s58, 1
    %s60 = scalar_select %p57, %s58, %s59
    %p63 = pneg %p57
    %p64 = scmp.eq.s32.totalorder %s8, 1
    %p65 = por %p63, %p64
    %p66 = scmp.ne.s32.totalorder %s58, %s61
    %p67 = scmp.eq.s32.totalorder %s8, 0
    %p68 = por %p66, %p67
    %p69 = scmp.ne.s32.totalorder %s58, %s61
    %p70 = scmp.eq.s32.totalorder %s13, 1
    %p71 = por %p69, %p70
    %p72 = scmp.ne.s32.totalorder %s61, %s62
    %p73 = scmp.eq.s32.totalorder %s13, 0
    %p74 = por %p72, %p73
    %p75 = scmp.ne.s32.totalorder %s61, %s62
    %p76 = scmp.eq.s32.totalorder %s14, 1
    %p77 = por %p75, %p76
    %p79 = scmp.ne.s32.totalorder %s62, %s78
    %p80 = scmp.eq.s32.totalorder %s14, 0
    %p81 = por %p79, %p80
    %s82 = ssub.s32 %s15, %s27
    %s83 = ssub.s32 %s16, %s23
    %s84 = sor.u32 %s82, %s83
    %p85 = scmp.eq.s32.totalorder %s84, 0
    %s87 = sadd.s32 %s86, 1
    %s88 = scalar_select %p85, %s86, %s87
    %p91 = pneg %p85
    %p92 = scmp.eq.s32.totalorder %s8, 1
    %p93 = por %p91, %p92
    %p94 = scmp.ne.s32.totalorder %s86, %s89
    %p95 = scmp.eq.s32.totalorder %s8, 0
    %p96 = por %p94, %p95
    %p97 = scmp.ne.s32.totalorder %s86, %s89
    %p98 = scmp.eq.s32.totalorder %s13, 1
    %p99 = por %p97, %p98
    %p100 = scmp.ne.s32.totalorder %s89, %s90
    %p101 = scmp.eq.s32.totalorder %s13, 0
    %p102 = por %p100, %p101
    %p103 = scmp.ne.s32.totalorder %s89, %s90
    %p104 = scmp.eq.s32.totalorder %s14, 1
    %p105 = por %p103, %p104
    %p107 = scmp.ne.s32.totalorder %s90, %s106
    %p108 = scmp.eq.s32.totalorder %s14, 0
    %p109 = por %p107, %p108
    %p110 = scmp.le.s32.totalorder 1, %s8
    %p111 = scmp.lt.s32.totalorder %s8, 3
    %p112 = pnand %p110, %p111
    %p113 = pneg %p112
    // Predicated region
    $region9: #{orbit_masker.3} parent=5 // pred_check
      _
    $region10: #{orbit_masker.3} parent=5 // pred_check_branch
      %115 = sbr.rel (%p112) target = $region12
    $region11: #{orbit_masker.3} parent=5 // pred_region
      %s116 = ssub.s32 %s8, 1
      // Predicated region
      $region13: #{orbit_masker.3} parent=11 // pred_check
        %p117 = pneg %p74
      $region14: #{orbit_masker.3} parent=11 // pred_check_branch
        %119 = sbr.rel (%p117) target = $region16
      $region15: #{orbit_masker.3} parent=11 // pred_region
        %p120 = scmp.lt.s32.totalorder %s17, 0
        %s121 = scalar_select %p120, %s17, 0
        %s122 = smul.addr %s121, 8
        %s123 = scalar_lea.vmem %s1, %s122
      $region16: #{orbit_masker.3} parent=11 // pred_fallthru
        _
    $region12: #{orbit_masker.3} parent=5 // pred_fallthru
      _
    %p124 = scmp.lt.s32.totalorder %s8, 2
    // Predicated region
    $region17: #{orbit_masker.3} parent=5 // pred_check
      %p125 = pneg %p124
    $region18: #{orbit_masker.3} parent=5 // pred_check_branch
      %127 = sbr.rel (%p125) target = $region20
    $region19: #{orbit_masker.3} parent=5 // pred_region
      // Predicated region
      $region21: #{orbit_masker.3} parent=19 // pred_check
        %p128 = pneg %p42
      $region22: #{orbit_masker.3} parent=19 // pred_check_branch
        %130 = sbr.rel (%p128) target = $region24
      $region23: #{orbit_masker.3} parent=19 // pred_region
        %p131 = scmp.lt.s32.totalorder %s15, 0
        %s132 = scalar_select %p131, %s15, 0
        %p133 = scmp.lt.s32.totalorder %s16, 1
        %s134 = scalar_select %p133, %s16, 1
        %s135 = smul.addr %s132, 2
        %s136 = sadd.s32 %s134, %s135
        %s137 = smul.addr %s136, 8
        %s138 = scalar_lea.vmem %s0, %s137
      $region24: #{orbit_masker.3} parent=19 // pred_fallthru
        _
    $region20: #{orbit_masker.3} parent=5 // pred_fallthru
      _
    %p139 = scmp.le.s32.totalorder 1, %s8
    %p140 = scmp.lt.s32.totalorder %s8, 3
    %p141 = pnand %p139, %p140
    %p142 = pneg %p141
    // Predicated region
    $region25: #{orbit_masker.3} parent=5 // pred_check
      _
    $region26: #{orbit_masker.3} parent=5 // pred_check_branch
      %144 = sbr.rel (%p141) target = $region28
    $region27: #{orbit_masker.3} parent=5 // pred_region
      %s145 = ssub.s32 %s8, 1
      %p146 = scmp.lt.s32.totalorder %s17, 0
      %s147 = scalar_select %p146, %s17, 0
      %p148 = scmp.lt.s32.totalorder %s18, 1
      %s149 = scalar_select %p148, %s18, 1
      %s150 = smul.addr %s147, 2
      %s151 = sadd.s32 %s149, %s150
      %s152 = smul.addr %s151, 8
      %s153 = scalar_lea.vmem %s0, %s152
      %p154 = pneg %p48
      %p155 = pneg %p45
      %p156 = scmp.lt.s32.totalorder %s17, 0
      %s157 = scalar_select %p156, %s17, 0
      %s158 = smul.addr %s157, 8
      %s159 = scalar_lea.vmem %s1, %s158
      %p160 = pneg %p74
      %p161 = pneg %p71
      %p162 = pneg %p102
      %p163 = pneg %p99
      %p164 = scmp.lt.s32.totalorder %s17, 0
      %s165 = scalar_select %p164, %s17, 0
      %p166 = scmp.lt.s32.totalorder %s18, 1
      %s167 = scalar_select %p166, %s18, 1
      %s168 = smul.addr %s165, 2
      %s169 = sadd.s32 %s167, %s168
      %s170 = smul.addr %s169, 8
      %s171 = scalar_lea.vmem %s2, %s170
      %p172 = scmp.lt.s32.totalorder %s17, 0
      %s173 = scalar_select %p172, %s17, 0
      %p174 = scmp.lt.s32.totalorder %s18, 1
      %s175 = scalar_select %p174, %s18, 1
      %s176 = smul.addr %s173, 2
      %s177 = sadd.s32 %s175, %s176
      %s178 = smul.addr %s177, 8
      %s179 = scalar_lea.vmem %s0, %s178
      %p180 = scmp.lt.s32.totalorder %s17, 0
      %s181 = scalar_select %p180, %s17, 0
      %s182 = smul.addr %s181, 8
      %s183 = scalar_lea.vmem %s1, %s182
      %p184 = scmp.lt.s32.totalorder %s17, 0
      %s185 = scalar_select %p184, %s17, 0
      %p186 = scmp.lt.s32.totalorder %s18, 1
      %s187 = scalar_select %p186, %s18, 1
      %s188 = smul.addr %s185, 2
      %s189 = sadd.s32 %s187, %s188
      %s190 = smul.addr %s189, 8
      %s191 = scalar_lea.vmem %s2, %s190
      %v192 = vld [vmem:[%s179] sm:$0xff]
      %v193 = vld [vmem:[%s183] sm:$0xff]
      %195 = vset.pattern.permute.xlu0 0
      %196 = vperm.xlu0 %195, %v193
      %v197 = vpop.permute.xlu0 %196
      %v199 = vmul.f32 %v192, %v197
      %200 = vst [vmem:[%s191] sm:$0xff] %v199
      %p201 = scmp.lt.s32.totalorder %s17, 0
      %s202 = scalar_select %p201, %s17, 0
      %p203 = scmp.lt.s32.totalorder %s18, 1
      %s204 = scalar_select %p203, %s18, 1
      %s205 = smul.addr %s202, 2
      %s206 = sadd.s32 %s204, %s205
      %s207 = smul.addr %s206, 8
      %s208 = scalar_lea.vmem %s2, %s207
      // Predicated region
      $region29: #{orbit_masker.3} parent=27 // pred_check
        %p209 = pneg %p99
      $region30: #{orbit_masker.3} parent=27 // pred_check_branch
        %211 = sbr.rel (%p209) target = $region32
      $region31: #{orbit_masker.3} parent=27 // pred_region
        _
      $region32: #{orbit_masker.3} parent=27 // pred_fallthru
        _
    $region28: #{orbit_masker.3} parent=5 // pred_fallthru
      _
    %p212 = scmp.le.s32.totalorder 2, %s8
    // Predicated region
    $region33: #{orbit_masker.3} parent=5 // pred_check
      %p213 = pneg %p212
    $region34: #{orbit_masker.3} parent=5 // pred_check_branch
      %215 = sbr.rel (%p213) target = $region36
    $region35: #{orbit_masker.3} parent=5 // pred_region
      %s216 = ssub.s32 %s8, 2
      // Predicated region
      $region37: #{orbit_masker.3} parent=35 // pred_check
        %p217 = pneg %p105
      $region38: #{orbit_masker.3} parent=35 // pred_check_branch
        %219 = sbr.rel (%p217) target = $region40
      $region39: #{orbit_masker.3} parent=35 // pred_region
        %p220 = scmp.lt.s32.totalorder %s19, 0
        %s221 = scalar_select %p220, %s19, 0
        %p222 = scmp.lt.s32.totalorder %s20, 1
        %s223 = scalar_select %p222, %s20, 1
        %s224 = smul.addr %s221, 2
        %s225 = sadd.s32 %s223, %s224
        %s226 = smul.addr %s225, 8
        %s227 = scalar_lea.vmem %s2, %s226
      $region40: #{orbit_masker.3} parent=35 // pred_fallthru
        _
    $region36: #{orbit_masker.3} parent=5 // pred_fallthru
      _
  $region6: #{orbit_masker.3} parent=0 // loop_footer
    %s12 = sadd.s32 1, %s8
  $region7: #{orbit_masker.3} parent=0 // loop_footer_branch
    %7 = sbr.rel target = $region3
  $region8: #{orbit_masker.3} parent=0 // loop_exit
    _

</llo_original>
